<compile_context>
chip_gen: v7x
topology: tpu7x:2x2x1
jax: 0.10.0
libtpu: 0.0.40
codegen_flags: <defaults>
</compile_context>

<pallas_src>
import jax
import jax.numpy as jnp
from jax.experimental import pallas as pl
from jax.experimental.pallas import tpu as pltpu


def _round_up(n, m):
    return ((n + m - 1) // m) * m


def _head_kernel(x_ref, w1_ref, b1_ref, w2_ref, b2_ref, o_ref):
    # dense: x @ W1 + b1  (bf16 MXU matmul, f32 accumulation).
    x = x_ref[...].astype(jnp.bfloat16)          # no-op if upstream already supplies bf16
    h = jnp.dot(x, w1_ref[...], preferred_element_type=jnp.float32)
    h = h + b1_ref[...]                          # b1 is (1, d_pad) f32, broadcasts over rows
    # sigmoid in f32 (EUP slot, effectively free here).
    h = jax.nn.sigmoid(h)
    # out_proj kept fully in f32 (W2 f32, h not downcast): K=128, N<=128 means
    # the extra MXU passes are free at this size and it tightens parity with
    # the f32 PyTorch reference.
    out = jnp.dot(h, w2_ref[...], preferred_element_type=jnp.float32)
    out = out + b2_ref[...]                      # b2 is (1, n_pad) f32
    o_ref[...] = out.astype(o_ref.dtype)
    # TODO(synk): dropout is identity at inference; training-mode dropout
    # (pltpu.prng_random_bits masking) is not implemented here.


def prepare_head_params(w_dense, b_dense, w_out, b_out,
                        *, weight_dtype=jnp.bfloat16, lane=128):
    """One-time parameter prep (call at init, NOT per forward).

    w_dense: (D, D) torch layout (out, in).  b_dense: (D,)
    w_out:   (num_labels, D) torch layout.   b_out:   (num_labels,)

    Returns kernel-ready, lane-padded arrays:
      w1 (d_pad, d_pad) bf16, b1 (1, d_pad) f32,
      w2 (d_pad, n_pad) f32,  b2 (1, n_pad) f32.
    All padding is zeros; padded logit columns / padded K rows contribute
    exactly 0 and are sliced off outside the kernel.
    """
    w_dense = jnp.asarray(w_dense, jnp.float32)
    b_dense = jnp.asarray(b_dense, jnp.float32)
    w_out = jnp.asarray(w_out, jnp.float32)
    b_out = jnp.asarray(b_out, jnp.float32)

    D = w_dense.shape[1]
    num_labels = w_out.shape[0]
    d_pad = _round_up(D, lane)          # feature / contraction dim, lane-aligned
    n_pad = _round_up(num_labels, lane)  # lane-dense output width

    w1 = jnp.zeros((d_pad, d_pad), weight_dtype)
    w1 = w1.at[:D, :D].set(w_dense.T.astype(weight_dtype))        # (d_pad, d_pad)
    b1 = jnp.zeros((1, d_pad), jnp.float32).at[:, :D].set(b_dense)

    # W2 in f32: tiny (d_pad * n_pad * 4 B), and its zero rows for k >= D
    # cancel the sigmoid(0)=0.5 values in the padded h columns.
    w2 = jnp.zeros((d_pad, n_pad), jnp.float32)
    w2 = w2.at[:D, :num_labels].set(w_out.T)                      # (d_pad, n_pad)
    b2 = jnp.zeros((1, n_pad), jnp.float32).at[:, :num_labels].set(b_out)

    return {"w1": w1, "b1": b1, "w2": w2, "b2": b2,
            "D": D, "d_pad": d_pad,
            "num_labels": num_labels, "n_pad": n_pad}


def wav2vec2_classification_head(x, params, *, tb=512, out_dtype=jnp.float32):
    """x: (B, D) or (B, d_pad) float32/bfloat16.  params: prepare_head_params().
    Returns (B, num_labels) logits in `out_dtype` (default f32; use bf16 on
    v5e to halve the logits writeback)."""
    w1, b1, w2, b2 = params["w1"], params["b1"], params["w2"], params["b2"]
    D, d_pad = params["D"], params["d_pad"]
    num_labels, n_pad = params["num_labels"], params["n_pad"]
    B = x.shape[0]

    # Feature-dim pad to lane width (ideally upstream already emits (B, d_pad)
    # — then this is skipped entirely).
    if x.shape[1] == D and d_pad != D:
        x = jnp.pad(x, ((0, 0), (0, d_pad - D)))
    assert x.shape[1] == d_pad, f"expected x width {D} or {d_pad}, got {x.shape[1]}"

    # Batch tile: multiple of 8 sublanes, capped at tb. Once B >= 16 force at
    # least 2 grid steps so v7x's second TensorCore is engaged; on v5e/v6e the
    # extra step costs ~0.35 us which is negligible at that size. No batch
    # padding: the final partial block is handled by the BlockSpec.
    if B >= 16:
        tile_b = min(tb, _round_up(pl.cdiv(B, 2), 8))
    else:
        tile_b = min(tb, _round_up(B, 8))
    grid = (pl.cdiv(B, tile_b),)

    # Advisory cost so XLA can overlap this tiny, latency-dominated call.
    itemsize = jnp.dtype(x.dtype).itemsize
    bytes_accessed = (
        B * d_pad * itemsize                                   # x
        + w1.shape[0] * w1.shape[1] * jnp.dtype(w1.dtype).itemsize
        + b1.shape[1] * 4 + b2.shape[1] * 4
        + w2.shape[0] * w2.shape[1] * 4
        + B * n_pad * jnp.dtype(out_dtype).itemsize)           # padded logits
    cost = pl.CostEstimate(
        flops=2 * B * d_pad * (d_pad + n_pad),
        transcendentals=B * d_pad,                             # sigmoid
        bytes_accessed=bytes_accessed)

    out = pl.pallas_call(
        _head_kernel,
        out_shape=jax.ShapeDtypeStruct((B, n_pad), out_dtype),
        grid=grid,
        in_specs=[
            pl.BlockSpec((tile_b, d_pad), lambda i: (i, 0)),   # x: tiled over batch
            pl.BlockSpec((d_pad, d_pad), lambda i: (0, 0)),    # W1: VMEM-resident
            pl.BlockSpec((1, d_pad), lambda i: (0, 0)),        # b1: VMEM-resident
            pl.BlockSpec((d_pad, n_pad), lambda i: (0, 0)),    # W2: VMEM-resident
            pl.BlockSpec((1, n_pad), lambda i: (0, 0)),        # b2: VMEM-resident
        ],
        out_specs=pl.BlockSpec((tile_b, n_pad), lambda i: (i, 0)),
        compiler_params=pltpu.CompilerParams(
            dimension_semantics=("parallel",)),                # megacore over batch tiles
        cost_estimate=cost,
    )(x, w1, b1, w2, b2)

    return out[:, :num_labels]


if __name__ == "__main__":
    # Small deterministic config consistent with the module:
    #   hidden_size = 32  ->  D = hidden_size + 57 = 89
    #   num_labels  = 4, batch B = 2
    hidden_size = 32
    D = hidden_size + 57
    num_labels = 4
    B = 2

    key = jax.random.PRNGKey(0)
    kx, kw1, kb1, kw2, kb2 = jax.random.split(key, 5)

    x = jax.random.normal(kx, (B, D), dtype=jnp.float32)
    # "nn.Linear"-style params (torch layout: (out_features, in_features)).
    w_dense = jax.random.normal(kw1, (D, D), dtype=jnp.float32) * 0.05
    b_dense = jax.random.normal(kb1, (D,), dtype=jnp.float32) * 0.05
    w_out = jax.random.normal(kw2, (num_labels, D), dtype=jnp.float32) * 0.05
    b_out = jax.random.normal(kb2, (num_labels,), dtype=jnp.float32) * 0.05

    # One-time parameter prep (hoisted out of the per-call path).
    params = prepare_head_params(w_dense, b_dense, w_out, b_out)

    head = jax.jit(lambda xx: wav2vec2_classification_head(xx, params))
    logits = jax.block_until_ready(head(x))
    assert logits.shape == (B, num_labels)

    # Reference 1: same math / same padded+bf16 params as the kernel (tight tol).
    x_pad = jnp.pad(x, ((0, 0), (0, params["d_pad"] - D))).astype(jnp.bfloat16)
    h = jnp.dot(x_pad, params["w1"], preferred_element_type=jnp.float32) + params["b1"]
    h = jax.nn.sigmoid(h)
    ref_kernel_math = (jnp.dot(h, params["w2"], preferred_element_type=jnp.float32)
                       + params["b2"])[:, :num_labels]
    assert jnp.allclose(logits, ref_kernel_math, atol=1e-3, rtol=1e-3), \
        "kernel vs same-math ref mismatch"

    # Reference 2: original f32 eval-mode PyTorch math (loose tol: W1/x are bf16).
    ref_f32 = jax.nn.sigmoid(x @ w_dense.T + b_dense) @ w_out.T + b_out
    assert jnp.allclose(logits, ref_f32, atol=5e-2, rtol=5e-2), \
        "kernel vs f32 ref mismatch"

    print("KERNEL_OK")
</pallas_src>

<mosaic_0001>
module attributes {stable_mosaic.version = 11 : i64} {
  func.func @_head_kernel(%arg0: i32, %arg1: memref<8x128xf32, #tpu.memory_space<vmem>>, %arg2: memref<128x128xbf16, #tpu.memory_space<vmem>>, %arg3: memref<1x128xf32, #tpu.memory_space<vmem>>, %arg4: memref<128x128xf32, #tpu.memory_space<vmem>>, %arg5: memref<1x128xf32, #tpu.memory_space<vmem>>, %arg6: memref<8x128xf32, #tpu.memory_space<vmem>>) attributes {dimension_semantics = [#tpu.dimension_semantics<parallel>], iteration_bounds = array<i64: 1>, scalar_prefetch = 0 : i64, scratch_operands = 0 : i64, tpu.core_type = #tpu.core_type<tc>, window_params = [{transform_indices = @transform_0, window_bounds = array<i64: 8, 128>}, {pipeline_mode = #tpu.pipeline_mode<synchronous>, transform_indices = @transform_1, window_bounds = array<i64: 128, 128>}, {pipeline_mode = #tpu.pipeline_mode<synchronous>, transform_indices = @transform_2, window_bounds = array<i64: 1, 128>}, {pipeline_mode = #tpu.pipeline_mode<synchronous>, transform_indices = @transform_3, window_bounds = array<i64: 128, 128>}, {pipeline_mode = #tpu.pipeline_mode<synchronous>, transform_indices = @transform_4, window_bounds = array<i64: 1, 128>}, {transform_indices = @transform_5, window_bounds = array<i64: 8, 128>}]} {
    %c0 = arith.constant 0 : index
    %c0_0 = arith.constant 0 : index
    %0 = vector.load %arg1[%c0, %c0_0] : memref<8x128xf32, #tpu.memory_space<vmem>>, vector<8x128xf32>
    %1 = arith.truncf %0 : vector<8x128xf32> to vector<8x128xbf16>
    %c0_1 = arith.constant 0 : index
    %c0_2 = arith.constant 0 : index
    %2 = vector.load %arg2[%c0_1, %c0_2] : memref<128x128xbf16, #tpu.memory_space<vmem>>, vector<128x128xbf16>
    %cst = arith.constant dense<0.000000e+00> : vector<8x128xf32>
    %3 = tpu.matmul %1, %2, %cst {dimension_numbers = #tpu.dot_dimension_numbers<[1], [0], [0], [1], [0, 0, 1, 1], [], []>} : vector<8x128xbf16>, vector<128x128xbf16>, vector<8x128xf32> -> vector<8x128xf32>
    %c0_3 = arith.constant 0 : index
    %c0_4 = arith.constant 0 : index
    %4 = vector.load %arg3[%c0_3, %c0_4] : memref<1x128xf32, #tpu.memory_space<vmem>>, vector<1x128xf32>
    %5 = vector.broadcast %4 : vector<1x128xf32> to vector<8x128xf32>
    %6 = arith.addf %3, %5 : vector<8x128xf32>
    %7 = arith.negf %6 : vector<8x128xf32>
    %8 = math.exp %7 : vector<8x128xf32>
    %cst_5 = arith.constant 1.000000e+00 : f32
    %9 = vector.broadcast %cst_5 : f32 to vector<8x128xf32>
    %10 = arith.addf %9, %8 : vector<8x128xf32>
    %11 = arith.divf %9, %10 : vector<8x128xf32>
    %c0_6 = arith.constant 0 : index
    %c0_7 = arith.constant 0 : index
    %12 = vector.load %arg4[%c0_6, %c0_7] : memref<128x128xf32, #tpu.memory_space<vmem>>, vector<128x128xf32>
    %cst_8 = arith.constant dense<0.000000e+00> : vector<8x128xf32>
    %13 = tpu.matmul %11, %12, %cst_8 {dimension_numbers = #tpu.dot_dimension_numbers<[1], [0], [0], [1], [0, 0, 1, 1], [], []>} : vector<8x128xf32>, vector<128x128xf32>, vector<8x128xf32> -> vector<8x128xf32>
    %c0_9 = arith.constant 0 : index
    %c0_10 = arith.constant 0 : index
    %14 = vector.load %arg5[%c0_9, %c0_10] : memref<1x128xf32, #tpu.memory_space<vmem>>, vector<1x128xf32>
    %15 = vector.broadcast %14 : vector<1x128xf32> to vector<8x128xf32>
    %16 = arith.addf %13, %15 : vector<8x128xf32>
    %c0_11 = arith.constant 0 : index
    %c0_12 = arith.constant 0 : index
    %17 = vector.load %arg6[%c0_11, %c0_12] : memref<8x128xf32, #tpu.memory_space<vmem>>, vector<8x128xf32>
    tpu.vector_store %arg6[%c0_11, %c0_12], %16 {strides = array<i32>} : memref<8x128xf32, #tpu.memory_space<vmem>>, vector<8x128xf32>,
    return
  }
  func.func @transform_0(%arg0: i32) -> (i32, i32) {
    %c0_i32 = arith.constant 0 : i32
    %c0_i32_0 = arith.constant 0 : i32
    return %arg0, %c0_i32 : i32, i32
  }
  func.func @transform_1(%arg0: i32) -> (i32, i32) {
    %c0_i32 = arith.constant 0 : i32
    %c0_i32_0 = arith.constant 0 : i32
    %c0_i32_1 = arith.constant 0 : i32
    return %c0_i32, %c0_i32_0 : i32, i32
  }
  func.func @transform_2(%arg0: i32) -> (i32, i32) {
    %c0_i32 = arith.constant 0 : i32
    %c0_i32_0 = arith.constant 0 : i32
    %c0_i32_1 = arith.constant 0 : i32
    return %c0_i32, %c0_i32_0 : i32, i32
  }
  func.func @transform_3(%arg0: i32) -> (i32, i32) {
    %c0_i32 = arith.constant 0 : i32
    %c0_i32_0 = arith.constant 0 : i32
    %c0_i32_1 = arith.constant 0 : i32
    return %c0_i32, %c0_i32_0 : i32, i32
  }
  func.func @transform_4(%arg0: i32) -> (i32, i32) {
    %c0_i32 = arith.constant 0 : i32
    %c0_i32_0 = arith.constant 0 : i32
    %c0_i32_1 = arith.constant 0 : i32
    return %c0_i32, %c0_i32_0 : i32, i32
  }
  func.func @transform_5(%arg0: i32) -> (i32, i32) {
    %c0_i32 = arith.constant 0 : i32
    %c0_i32_0 = arith.constant 0 : i32
    return %arg0, %c0_i32 : i32, i32
  }
}

</mosaic_0001>

<llo_original>
// kernel: _lambda_.1
$region0: #{_lambda_.1}
  #allocation0 [shape = 'u32[]', space=smem, size = 0x4, offset = 0x4, fixed_abs, tag = 'smem constant byte address 0x4 - core index']
  #allocation1 [shape = 'u32[144,128]{1,0:T(1,128)}', space=vmem, size = 0x12000, scoped, tag = 'internal scratch']
  %s0 = inlined_call_operand.vmem [shape: f32[2,128], index: 0, kind: input, shape index: {}]
  %s1 = inlined_call_operand.hbm [shape: bf16[128,128], index: 1, kind: input, shape index: {}]
  %s2 = inlined_call_operand.vmem [shape: f32[1,128], index: 2, kind: input, shape index: {}]
  %s3 = inlined_call_operand.hbm [shape: f32[128,128], index: 3, kind: input, shape index: {}]
  %s4 = inlined_call_operand.vmem [shape: f32[1,128], index: 4, kind: input, shape index: {}]
  %s5 = inlined_call_operand.hbm [shape: f32[2,128], index: 5, kind: output, shape index: {}]
  %s6 = sld [smem:[#allocation0]]
  $region38: #{_lambda_.1} parent=0
    _
  %s8 = ssub.s32 1, %s6
  %s9 = scalar_select 0, %s8, %s6
  $region1: #{_lambda_.1} parent=0
    #allocation2 [shape = 'u8[32768]{0}', space=vmem, size = 0x8000, scoped, tag = 'input window, operand 1, single buffered']
    #allocation3 [shape = 's32[1]{0}', space=sflag, size = 0x4, scoped, tag = 'scoped memory for _lambda_.1']
    #allocation4 [shape = 's32[1]{0}', space=sflag, size = 0x4, scoped, tag = 'scoped memory for _lambda_.1']
    #allocation5 [shape = 'u8[65536]{0}', space=vmem, size = 0x10000, scoped, tag = 'input window, operand 3, single buffered']
    #allocation6 [shape = 's32[1]{0}', space=sflag, size = 0x4, scoped, tag = 'scoped memory for _lambda_.1']
    #allocation7 [shape = 'u8[4096]{0}', space=vmem, size = 0x1000, scoped, tag = 'output window, operand 0, single buffered']
    %10 = vsyncpa [#allocation3], 0
    %11 = vsyncpa [#allocation6], 0
    %12 = vsyncpa [#allocation4], 0
    // Predicated region
    $region2: #{_lambda_.1} parent=1 // pred_check
      _
    $region3: #{_lambda_.1} parent=1 // pred_check_branch
      %14 = sbr.rel (0) target = $region5
    $region4: #{_lambda_.1} parent=1 // pred_region
      _
    $region5: #{_lambda_.1} parent=1 // pred_fallthru
      _
    // Predicated region
    $region6: #{_lambda_.1} parent=1 // pred_check
      _
    $region7: #{_lambda_.1} parent=1 // pred_check_branch
      %16 = sbr.rel (0) target = $region9
    $region8: #{_lambda_.1} parent=1 // pred_region
      %s18 = ssub.s32 1024, 1024
      %19 = vsyncadd [#allocation3], %s18
      %s20 = sshll.u32 [#allocation2], 4
      %s21 = int_to_ptr.vmem [resolvable:$true] %s20
      %26 = dma.hbm_to_vmem [thread:$0]  %s1, 1024, %s21, [#allocation3], 64, 64, 4
    $region9: #{_lambda_.1} parent=1 // pred_fallthru
      _
    // Predicated region
    $region10: #{_lambda_.1} parent=1 // pred_check
      _
    $region11: #{_lambda_.1} parent=1 // pred_check_branch
      %28 = sbr.rel (0) target = $region13
    $region12: #{_lambda_.1} parent=1 // pred_region
      _
    $region13: #{_lambda_.1} parent=1 // pred_fallthru
      _
    // Predicated region
    $region14: #{_lambda_.1} parent=1 // pred_check
      _
    $region15: #{_lambda_.1} parent=1 // pred_check_branch
      %30 = sbr.rel (0) target = $region17
    $region16: #{_lambda_.1} parent=1 // pred_region
      %s32 = ssub.s32 2048, 2048
      %33 = vsyncadd [#allocation6], %s32
      %s34 = sshll.u32 [#allocation5], 4
      %s35 = int_to_ptr.vmem [resolvable:$true] %s34
      %40 = dma.hbm_to_vmem [thread:$0]  %s3, 2048, %s35, [#allocation6], 128, 128, 8
    $region17: #{_lambda_.1} parent=1 // pred_fallthru
      _
    // Predicated region
    $region18: #{_lambda_.1} parent=1 // pred_check
      _
    $region19: #{_lambda_.1} parent=1 // pred_check_branch
      %42 = sbr.rel (0) target = $region21
    $region20: #{_lambda_.1} parent=1 // pred_region
      _
    $region21: #{_lambda_.1} parent=1 // pred_fallthru
      _
    // Predicated region
    $region22: #{_lambda_.1} parent=1 // pred_check
      _
    $region23: #{_lambda_.1} parent=1 // pred_check_branch
      %44 = sbr.rel (0) target = $region25
    $region24: #{_lambda_.1} parent=1 // pred_region
      %45 = dma.done [#allocation3], 1024
    $region25: #{_lambda_.1} parent=1 // pred_fallthru
      _
    // Predicated region
    $region26: #{_lambda_.1} parent=1 // pred_check
      _
    $region27: #{_lambda_.1} parent=1 // pred_check_branch
      %47 = sbr.rel (0) target = $region29
    $region28: #{_lambda_.1} parent=1 // pred_region
      %48 = dma.done [#allocation6], 2048
    $region29: #{_lambda_.1} parent=1 // pred_fallthru
      _
    %v50 = vld [vmem:[%s0] sm:$0xff]
    %v51 = vpack.c.bf16 %v50, %v50
    %v52 = vld [vmem:[#allocation2] sm:$0xf]
    %v53 = vld [vmem:[#allocation2 + $0x4] sm:$0xf]
    %v54 = vld [vmem:[#allocation2 + $0x8] sm:$0xf]
    %v55 = vld [vmem:[#allocation2 + $0xc] sm:$0xf]
    %v56 = vld [vmem:[#allocation2 + $0x10] sm:$0xf]
    %v57 = vld [vmem:[#allocation2 + $0x14] sm:$0xf]
    %v58 = vld [vmem:[#allocation2 + $0x18] sm:$0xf]
    %v59 = vld [vmem:[#allocation2 + $0x1c] sm:$0xf]
    %v60 = vld [vmem:[#allocation2 + $0x20] sm:$0xf]
    %v61 = vld [vmem:[#allocation2 + $0x24] sm:$0xf]
    %v62 = vld [vmem:[#allocation2 + $0x28] sm:$0xf]
    %v63 = vld [vmem:[#allocation2 + $0x2c] sm:$0xf]
    %v64 = vld [vmem:[#allocation2 + $0x30] sm:$0xf]
    %v65 = vld [vmem:[#allocation2 + $0x34] sm:$0xf]
    %v66 = vld [vmem:[#allocation2 + $0x38] sm:$0xf]
    %v67 = vld [vmem:[#allocation2 + $0x3c] sm:$0xf]
    %v68 = vld [vmem:[%s2] sm:$0x1]
    %v70 = vlaneseq
    %v71 = vshrl.u32 %v70, 7
    %v72 = vsub.s32 0, %v71
    %v73 = vrot.slane %v68, %v72
    %v91 = vunpack.c.l.b16 %v52
    %v92 = vunpack.c.l.b16 %v53
    %v93 = vunpack.c.l.b16 %v54
    %v94 = vunpack.c.l.b16 %v55
    %v95 = vunpack.c.l.b16 %v56
    %v96 = vunpack.c.l.b16 %v57
    %v97 = vunpack.c.l.b16 %v58
    %v98 = vunpack.c.l.b16 %v59
    %v99 = vunpack.c.l.b16 %v60
    %v100 = vunpack.c.l.b16 %v61
    %v101 = vunpack.c.l.b16 %v62
    %v102 = vunpack.c.l.b16 %v63
    %v103 = vunpack.c.l.b16 %v64
    %v104 = vunpack.c.l.b16 %v65
    %v105 = vunpack.c.l.b16 %v66
    %v106 = vunpack.c.l.b16 %v67
    %v107 = vpack.c.b16 %v92, %v91
    %v108 = vpack.c.b16 %v94, %v93
    %v109 = vpack.c.b16 %v96, %v95
    %v110 = vpack.c.b16 %v98, %v97
    %v111 = vpack.c.b16 %v100, %v99
    %v112 = vpack.c.b16 %v102, %v101
    %v113 = vpack.c.b16 %v104, %v103
    %v114 = vpack.c.b16 %v106, %v105
    %123 = vmatprep.subr.bf16.mxu0 0
    %124 = vmatpush1.bf16.msra.mxu0 %v107
    %125 = vmatprep.subr.bf16.mxu0 0
    %126 = vmatpush1.bf16.msra.mxu0 %v108
    %127 = vmatprep.subr.bf16.mxu0 0
    %128 = vmatpush1.bf16.msra.mxu0 %v109
    %129 = vmatprep.subr.bf16.mxu0 0
    %130 = vmatpush1.bf16.msra.mxu0 %v110
    %131 = vmatprep.subr.bf16.mxu0 0
    %132 = vmatpush1.bf16.msra.mxu0 %v111
    %133 = vmatprep.subr.bf16.mxu0 0
    %134 = vmatpush1.bf16.msra.mxu0 %v112
    %135 = vmatprep.subr.bf16.mxu0 0
    %136 = vmatpush1.bf16.msra.mxu0 %v113
    %137 = vmatprep.subr.bf16.mxu0 0
    %138 = vmatpush1.bf16.msra.mxu0 %v114
    %139 = vmatprep.subr.bf16.mxu0 0
    %140 = vmatpush1.bf16.msra.mxu0 0
    %141 = vmatprep.subr.bf16.mxu0 0
    %142 = vmatpush1.bf16.msra.mxu0 0
    %143 = vmatprep.subr.bf16.mxu0 0
    %144 = vmatpush1.bf16.msra.mxu0 0
    %145 = vmatprep.subr.bf16.mxu0 0
    %146 = vmatpush1.bf16.msra.mxu0 0
    %147 = vmatprep.subr.bf16.mxu0 0
    %148 = vmatpush1.bf16.msra.mxu0 0
    %149 = vmatprep.subr.bf16.mxu0 0
    %150 = vmatpush1.bf16.msra.mxu0 0
    %151 = vmatprep.subr.bf16.mxu0 0
    %152 = vmatpush1.bf16.msra.mxu0 0
    %153 = vmatprep.subr.bf16.mxu0 0
    %154 = vmatpush1.bf16.msra.mxu0 0
    %155 = vmatprep.mubr.bf16.mxu0 0
    %156 = vmatmul.mubr.bf16.gmra.mrb[0].mxu0 %v51
    %v157 = vpop.f32.mrb[0].mxu0
    %v158 = vadd.f32 %v73, %v157
    %v159 = vpop.f32.mrb[0].mxu0
    %v160 = vpop.f32.mrb[0].mxu0
    %v161 = vpop.f32.mrb[0].mxu0
    %162 = vdwg.mxu0
    %v163 = vxor.u32 %v158, 2147483648
    %v164 = vmul.f32 %v163, 1.442695
    %v165 = vpow.pop %v164
    %v166 = vadd.f32 %v165, 1.0
    %v167 = vrcp.pop %v166
    %v168 = vmul.f32 1.0, %v167
    %v169 = vld [vmem:[#allocation5] sm:$0xff]
    %v170 = vld [vmem:[#allocation5 + $0x8] sm:$0xff]
    %v171 = vld [vmem:[#allocation5 + $0x10] sm:$0xff]
    %v172 = vld [vmem:[#allocation5 + $0x18] sm:$0xff]
    %v173 = vld [vmem:[#allocation5 + $0x20] sm:$0xff]
    %v174 = vld [vmem:[#allocation5 + $0x28] sm:$0xff]
    %v175 = vld [vmem:[#allocation5 + $0x30] sm:$0xff]
    %v176 = vld [vmem:[#allocation5 + $0x38] sm:$0xff]
    %v177 = vld [vmem:[#allocation5 + $0x40] sm:$0xff]
    %v178 = vld [vmem:[#allocation5 + $0x48] sm:$0xff]
    %v179 = vld [vmem:[#allocation5 + $0x50] sm:$0xff]
    %v180 = vld [vmem:[#allocation5 + $0x58] sm:$0xff]
    %v181 = vld [vmem:[#allocation5 + $0x60] sm:$0xff]
    %v182 = vld [vmem:[#allocation5 + $0x68] sm:$0xff]
    %v183 = vld [vmem:[#allocation5 + $0x70] sm:$0xff]
    %v184 = vld [vmem:[#allocation5 + $0x78] sm:$0xff]
    %v185 = vld [vmem:[%s4] sm:$0x1]
    %v187 = vlaneseq
    %v188 = vshrl.u32 %v187, 7
    %v189 = vsub.s32 0, %v188
    %v190 = vrot.slane %v185, %v189
    %192 = vmatprep.subr.mxu0 0.0
    %193 = vmatpush1.msra.mxu0 %v169
    %194 = vmatprep.subr.mxu0 0.0
    %195 = vmatpush1.msra.mxu0 %v170
    %196 = vmatprep.subr.mxu0 0.0
    %197 = vmatpush1.msra.mxu0 %v171
    %198 = vmatprep.subr.mxu0 0.0
    %199 = vmatpush1.msra.mxu0 %v172
    %200 = vmatprep.subr.mxu0 0.0
    %201 = vmatpush1.msra.mxu0 %v173
    %202 = vmatprep.subr.mxu0 0.0
    %203 = vmatpush1.msra.mxu0 %v174
    %204 = vmatprep.subr.mxu0 0.0
    %205 = vmatpush1.msra.mxu0 %v175
    %206 = vmatprep.subr.mxu0 0.0
    %207 = vmatpush1.msra.mxu0 %v176
    %208 = vmatprep.subr.mxu0 0.0
    %209 = vmatpush1.msra.mxu0 %v177
    %210 = vmatprep.subr.mxu0 0.0
    %211 = vmatpush1.msra.mxu0 %v178
    %212 = vmatprep.subr.mxu0 0.0
    %213 = vmatpush1.msra.mxu0 %v179
    %214 = vmatprep.subr.mxu0 0.0
    %215 = vmatpush1.msra.mxu0 %v180
    %216 = vmatprep.subr.mxu0 0.0
    %217 = vmatpush1.msra.mxu0 %v181
    %218 = vmatprep.subr.mxu0 0.0
    %219 = vmatpush1.msra.mxu0 %v182
    %220 = vmatprep.subr.mxu0 0.0
    %221 = vmatpush1.msra.mxu0 %v183
    %222 = vmatprep.subr.mxu0 0.0
    %223 = vmatpush1.msra.mxu0 %v184
    %224 = vmatprep.subr.mxu0 0.0
    %225 = vmatpush1.msra.mxu0 0.0
    %226 = vmatprep.subr.mxu0 0.0
    %227 = vmatpush1.msra.mxu0 0.0
    %228 = vmatprep.subr.mxu0 0.0
    %229 = vmatpush1.msra.mxu0 0.0
    %230 = vmatprep.subr.mxu0 0.0
    %231 = vmatpush1.msra.mxu0 0.0
    %232 = vmatprep.subr.mxu0 0.0
    %233 = vmatpush1.msra.mxu0 0.0
    %234 = vmatprep.subr.mxu0 0.0
    %235 = vmatpush1.msra.mxu0 0.0
    %236 = vmatprep.subr.mxu0 0.0
    %237 = vmatpush1.msra.mxu0 0.0
    %238 = vmatprep.subr.mxu0 0.0
    %239 = vmatpush1.msra.mxu0 0.0
    %240 = vmatprep.subr.mxu0 0.0
    %241 = vmatpush1.msra.mxu0 0.0
    %242 = vmatprep.subr.mxu0 0.0
    %243 = vmatpush1.msra.mxu0 0.0
    %244 = vmatprep.subr.mxu0 0.0
    %245 = vmatpush1.msra.mxu0 0.0
    %246 = vmatprep.subr.mxu0 0.0
    %247 = vmatpush1.msra.mxu0 0.0
    %248 = vmatprep.subr.mxu0 0.0
    %249 = vmatpush1.msra.mxu0 0.0
    %250 = vmatprep.subr.mxu0 0.0
    %251 = vmatpush1.msra.mxu0 0.0
    %252 = vmatprep.subr.mxu0 0.0
    %253 = vmatpush1.msra.mxu0 0.0
    %254 = vmatprep.subr.mxu0 0.0
    %255 = vmatpush1.msra.mxu0 0.0
    %256 = vmatprep.mubr.f32.mxu0 0.0
    %257 = vmatmul.mubr.f32.gmra.mrb[0].mxu0 %v168
    %v258 = vpop.f32.mrb[0].mxu0
    %v259 = vadd.f32 %v190, %v258
    %v260 = vpop.f32.mrb[0].mxu0
    %261 = vdwg.mxu0
    %262 = vst [vmem:[#allocation7] sm:$0xff] %v259
    // Predicated region
    $region30: #{_lambda_.1} parent=1 // pred_check
      _
    $region31: #{_lambda_.1} parent=1 // pred_check_branch
      %264 = sbr.rel (0) target = $region33
    $region32: #{_lambda_.1} parent=1 // pred_region
      %s266 = ssub.s32 128, 32
      %267 = vsyncadd [#allocation4], %s266
      %s268 = sshll.u32 [#allocation7], 4
      %s269 = int_to_ptr.vmem [resolvable:$true] %s268
      %274 = dma.vmem_to_hbm [thread:$0]  %s269, 32, %s5, [#allocation4], 32, 32, 2
    $region33: #{_lambda_.1} parent=1 // pred_fallthru
      _
    // Predicated region
    $region34: #{_lambda_.1} parent=1 // pred_check
      _
    $region35: #{_lambda_.1} parent=1 // pred_check_branch
      %276 = sbr.rel (0) target = $region37
    $region36: #{_lambda_.1} parent=1 // pred_region
      %277 = dma.done [#allocation4], 128
    $region37: #{_lambda_.1} parent=1 // pred_fallthru
      _
    %278 = vsyncpa [#allocation3], 1
    %279 = vsyncpa [#allocation6], 1
    %280 = vsyncpa [#allocation4], 1

</llo_original>
